<compile_context>
chip_gen: v7x
topology: tpu7x:2x2x1
jax: 0.10.0
libtpu: 0.0.40
codegen_flags: <defaults>
</compile_context>

<pallas_src>
import math
from functools import partial

import jax
import jax.numpy as jnp
import numpy as np
from jax.experimental import pallas as pl
from jax.experimental.pallas import tpu as pltpu


# ----------------------------- Pallas kernel --------------------------------
def _state_to_switch_kernel(xT_ref, wT_ref, bT_ref, mix_ref, out_ref, *, n_base_F):
    """
    xT_ref  : (n_switch, TB)                switch^T, batch on lanes
    wT_ref  : (n_base_F + n_base_S, n_switch)  [W_F | W_S]^T  (fused link weights)
    bT_ref  : (n_base_F + n_base_S, 1)         [b_F | b_S]^T
    mix_ref : (n_fo + n_switch, n_base_F + n_base_S)  block-diag [F_base^T, 0; 0, LSinv_logdiag^T]
    out_ref : (n_fo + n_switch, TB)         rows [:n_fo] = F_flat^T, rows [n_fo:] = logdiag^T
    """
    x = xT_ref[...].astype(jnp.float32)                               # (n_switch, TB)

    # Fused link matmul for both heads in one MXU pass.
    logits = jnp.dot(wT_ref[...], x, preferred_element_type=jnp.float32) + bT_ref[...]

    # Per-head (segment) softmax over the sublane axis:
    # rows [0, n_base_F) -> head 'F', rows [n_base_F, :) -> head 'S'.
    row = jax.lax.broadcasted_iota(jnp.int32, logits.shape, 0)
    is_F = row < n_base_F
    neg_inf = jnp.float32(-jnp.inf)
    max_F = jnp.max(jnp.where(is_F, logits, neg_inf), axis=0, keepdims=True)
    max_S = jnp.max(jnp.where(is_F, neg_inf, logits), axis=0, keepdims=True)
    e = jnp.exp(logits - jnp.where(is_F, max_F, max_S))
    sum_F = jnp.sum(jnp.where(is_F, e, 0.0), axis=0, keepdims=True)
    sum_S = jnp.sum(jnp.where(is_F, 0.0, e), axis=0, keepdims=True)

    # EUP approx reciprocal + one Newton step (VPU) ~ full f32 precision, no VALU divide.
    r_F = pl.reciprocal(sum_F, approx=True)
    r_F = r_F * (2.0 - sum_F * r_F)
    r_S = pl.reciprocal(sum_S, approx=True)
    r_S = r_S * (2.0 - sum_S * r_S)
    weights = e * jnp.where(is_F, r_F, r_S)                           # (n_base_tot, TB)

    # Single fused MXU pass through the block-diagonal mixing matrix:
    #   rows [0, n_fo)            : F_flat^T   = F_base_flat^T @ weights_F
    #   rows [n_fo, n_fo+n_switch): logdiag^T  = LSinv_logdiag^T @ weights_S
    out_ref[...] = jnp.dot(mix_ref[...], weights, preferred_element_type=jnp.float32)


# ------------------------------- wrapper -------------------------------------
def state_to_switch_params(switch, params, *, n_switch, n_state, n_base_F, n_base_S,
                           max_resident_batch=4096, tile_b=1024):
    """switch: (B, n_switch) float32. Returns dict(F, S, LS) matching the torch module."""
    B = switch.shape[0]
    n_fo = n_switch * n_state
    n_base_tot = n_base_F + n_base_S
    n_out_tot = n_fo + n_switch

    # ---- pack parameters (3 constant-index blocks instead of 6 tiny DMA streams) ----
    WcatT = jnp.concatenate([params["W_F"], params["W_S"]], axis=1).T   # (n_base_tot, n_switch)
    bcatT = jnp.concatenate([params["b_F"], params["b_S"]], axis=1).T   # (n_base_tot, 1)
    mix = jnp.zeros((n_out_tot, n_base_tot), jnp.float32)
    mix = mix.at[:n_fo, :n_base_F].set(params["F_base_flat"].T)         # (n_fo, n_base_F)
    mix = mix.at[n_fo:, n_base_F:].set(params["LSinv_logdiag"].T)       # (n_switch, n_base_S)

    # ---- batch on lanes ----
    xT = switch.astype(jnp.float32).T                                   # (n_switch, B)

    if B <= max_resident_batch:
        # No grid loop: whole batch resident in one step.
        TB, B_pad = B, B
    else:
        assert tile_b % 128 == 0, "lane tiles must be multiples of 128"
        TB = tile_b
        B_pad = ((B + TB - 1) // TB) * TB
        if B_pad != B:
            xT = jnp.pad(xT, ((0, 0), (0, B_pad - B)))   # padded cols sliced off below
    grid = (B_pad // TB,)

    kernel = partial(_state_to_switch_kernel, n_base_F=n_base_F)

    Y_T = pl.pallas_call(
        kernel,
        out_shape=jax.ShapeDtypeStruct((n_out_tot, B_pad), jnp.float32),
        grid_spec=pltpu.PrefetchScalarGridSpec(
            num_scalar_prefetch=0,
            grid=grid,
            in_specs=[
                pl.BlockSpec((n_switch, TB), lambda i: (0, i)),           # switch^T (batch tiled on lanes)
                pl.BlockSpec((n_base_tot, n_switch), lambda i: (0, 0)),   # fused link W^T (resident)
                pl.BlockSpec((n_base_tot, 1), lambda i: (0, 0)),          # fused link b^T (resident)
                pl.BlockSpec((n_out_tot, n_base_tot), lambda i: (0, 0)),  # block-diag mix (resident)
            ],
            out_specs=pl.BlockSpec((n_out_tot, TB), lambda i: (0, i)),    # lane-dense output
        ),
        compiler_params=pltpu.CompilerParams(
            dimension_semantics=("parallel",)),
    )(xT, WcatT, bcatT, mix)

    # ---- glue: transpose back, split, exp, diag_embed (matches torch semantics) ----
    Y = Y_T.T[:B]                                        # (B, n_fo + n_switch)
    F = Y[:, :n_fo].reshape(B, n_switch, n_state)
    logdiag = Y[:, n_fo:]                                # weighted avg of LSinv_logdiag
    LS_diag = jnp.exp(-logdiag)
    S_diag = LS_diag * LS_diag                           # exp(-2*logdiag), derived in glue
    eye = jnp.eye(n_switch, dtype=jnp.float32)
    S = S_diag[:, :, None] * eye[None]
    LS = LS_diag[:, :, None] * eye[None]
    return {"F": F, "S": S, "LS": LS}


# ------------------------ deterministic parameter init -----------------------
def init_params(key, *, n_switch, n_state, n_base_F, n_base_S,
                init_scale_S_diag=(1e-4, 1.0)):
    k_f, k_ls, k_wf, k_bf, k_ws, k_bs = jax.random.split(key, 6)

    # _F: orthogonal init of (n_base_F, n_switch, n_state); F_scaling = 1.0 cancels.
    F_base = jax.nn.initializers.orthogonal()(
        k_f, (n_base_F, n_switch * n_state), jnp.float32)

    # _LSinv_logdiag: -linspace(log s0, log s1, n_base_S), independently permuted per switch.
    log_scale = jnp.log(jnp.asarray(init_scale_S_diag, dtype=jnp.float32))
    base = -jnp.linspace(log_scale[0], log_scale[1], n_base_S)
    cols = []
    for s in range(n_switch):
        perm = jax.random.permutation(jax.random.fold_in(k_ls, s), n_base_S)
        cols.append(base[perm])
    LSinv_logdiag = jnp.stack(cols, axis=-1)  # (n_base_S, n_switch)

    # IndividualLink: one Linear per head (torch nn.Linear default uniform init).
    def linear_init(kw, kb, d_in, d_out):
        bound = 1.0 / math.sqrt(d_in)
        W = jax.random.uniform(kw, (d_in, d_out), jnp.float32, -bound, bound)
        b = jax.random.uniform(kb, (1, d_out), jnp.float32, -bound, bound)
        return W, b

    W_F, b_F = linear_init(k_wf, k_bf, n_switch, n_base_F)
    W_S, b_S = linear_init(k_ws, k_bs, n_switch, n_base_S)

    return {
        "F_base_flat": F_base,          # (n_base_F, n_switch * n_state)
        "LSinv_logdiag": LSinv_logdiag, # (n_base_S, n_switch)
        "W_F": W_F, "b_F": b_F,
        "W_S": W_S, "b_S": b_S,
    }


# ------------------------------ pure-JAX reference ---------------------------
def reference(switch, params, *, n_switch, n_state):
    wF = jax.nn.softmax(switch @ params["W_F"] + params["b_F"], axis=-1)
    wS = jax.nn.softmax(switch @ params["W_S"] + params["b_S"], axis=-1)
    F_base = params["F_base_flat"].reshape(-1, n_switch, n_state)
    F = jnp.einsum("...k,koi->...oi", wF, F_base)
    logdiag = jnp.einsum("...k,kq->...q", wS, params["LSinv_logdiag"])
    LS = jax.vmap(jnp.diag)(jnp.exp(-logdiag))
    S = jax.vmap(jnp.diag)(jnp.exp(-2.0 * logdiag))
    return {"F": F, "S": S, "LS": LS}


if __name__ == "__main__":
    n_switch, n_state = 5, 6
    n_base_F, n_base_S = 10, 10

    key = jax.random.PRNGKey(0)
    k_params, k_x1, k_x2 = jax.random.split(key, 3)
    params = init_params(k_params, n_switch=n_switch, n_state=n_state,
                         n_base_F=n_base_F, n_base_S=n_base_S)

    # Case 1: small batch -> grid=(1,), whole batch resident on the lane axis.
    B1 = 16
    switch1 = jax.random.normal(k_x1, (B1, n_switch), jnp.float32)
    out1 = state_to_switch_params(switch1, params, n_switch=n_switch, n_state=n_state,
                                  n_base_F=n_base_F, n_base_S=n_base_S)
    out1 = jax.block_until_ready(out1)

    # Case 2: tiled path -> 128-lane batch tiles, tail padding + slice (grid=(2,)).
    B2 = 200
    switch2 = jax.random.normal(k_x2, (B2, n_switch), jnp.float32)
    out2 = state_to_switch_params(switch2, params, n_switch=n_switch, n_state=n_state,
                                  n_base_F=n_base_F, n_base_S=n_base_S,
                                  max_resident_batch=64, tile_b=128)
    out2 = jax.block_until_ready(out2)

    # Tolerance accommodates the EUP approx-reciprocal seed (polished by one Newton step).
    for out, sw in ((out1, switch1), (out2, switch2)):
        ref = reference(sw, params, n_switch=n_switch, n_state=n_state)
        for name in ("F", "S", "LS"):
            np.testing.assert_allclose(np.asarray(out[name]), np.asarray(ref[name]),
                                       rtol=2e-3, atol=1e-6)

    print("KERNEL_OK")
</pallas_src>

<mosaic_0001>
module attributes {stable_mosaic.version = 11 : i64} {
  func.func @_state_to_switch_kernel(%arg0: i32, %arg1: memref<5x16xf32, #tpu.memory_space<vmem>>, %arg2: memref<20x5xf32, #tpu.memory_space<vmem>>, %arg3: memref<20x1xf32, #tpu.memory_space<vmem>>, %arg4: memref<35x20xf32, #tpu.memory_space<vmem>>, %arg5: memref<35x16xf32, #tpu.memory_space<vmem>>) attributes {dimension_semantics = [#tpu.dimension_semantics<parallel>], iteration_bounds = array<i64: 1>, scalar_prefetch = 0 : i64, scratch_operands = 0 : i64, tpu.core_type = #tpu.core_type<tc>, window_params = [{transform_indices = @transform_0, window_bounds = array<i64: 5, 16>}, {pipeline_mode = #tpu.pipeline_mode<synchronous>, transform_indices = @transform_1, window_bounds = array<i64: 20, 5>}, {pipeline_mode = #tpu.pipeline_mode<synchronous>, transform_indices = @transform_2, window_bounds = array<i64: 20, 1>}, {pipeline_mode = #tpu.pipeline_mode<synchronous>, transform_indices = @transform_3, window_bounds = array<i64: 35, 20>}, {transform_indices = @transform_4, window_bounds = array<i64: 35, 16>}]} {
    %c0 = arith.constant 0 : index
    %c0_0 = arith.constant 0 : index
    %0 = vector.load %arg1[%c0, %c0_0] : memref<5x16xf32, #tpu.memory_space<vmem>>, vector<5x16xf32>
    %c0_1 = arith.constant 0 : index
    %c0_2 = arith.constant 0 : index
    %1 = vector.load %arg2[%c0_1, %c0_2] : memref<20x5xf32, #tpu.memory_space<vmem>>, vector<20x5xf32>
    %cst = arith.constant dense<0.000000e+00> : vector<20x16xf32>
    %2 = tpu.matmul %1, %0, %cst {dimension_numbers = #tpu.dot_dimension_numbers<[1], [0], [0], [1], [0, 0, 1, 1], [], []>} : vector<20x5xf32>, vector<5x16xf32>, vector<20x16xf32> -> vector<20x16xf32>
    %c0_3 = arith.constant 0 : index
    %c0_4 = arith.constant 0 : index
    %3 = vector.load %arg3[%c0_3, %c0_4] : memref<20x1xf32, #tpu.memory_space<vmem>>, vector<20x1xf32>
    %4 = vector.broadcast %3 : vector<20x1xf32> to vector<20x16xf32>
    %5 = arith.addf %2, %4 : vector<20x16xf32>
    %6 = tpu.iota {dimensions = array<i32: 0>} : vector<20x16xi32>
    %c10_i32 = arith.constant 10 : i32
    %7 = vector.broadcast %c10_i32 : i32 to vector<20x16xi32>
    %8 = arith.cmpi slt, %6, %7 : vector<20x16xi32>
    %cst_5 = arith.constant 0xFF800000 : f32
    %9 = vector.broadcast %cst_5 : f32 to vector<20x16xf32>
    %10 = arith.select %8, %5, %9 : vector<20x16xi1>, vector<20x16xf32>
    %cst_6 = arith.constant dense<0xFF800000> : vector<16xf32>
    %11 = vector.multi_reduction <maximumf>, %10, %cst_6 [0] : vector<20x16xf32> to vector<16xf32>
    %12 = vector.shape_cast %11 : vector<16xf32> to vector<1x16xf32>
    %cst_7 = arith.constant 0xFF800000 : f32
    %13 = vector.broadcast %cst_7 : f32 to vector<20x16xf32>
    %14 = arith.select %8, %13, %5 : vector<20x16xi1>, vector<20x16xf32>
    %cst_8 = arith.constant dense<0xFF800000> : vector<16xf32>
    %15 = vector.multi_reduction <maximumf>, %14, %cst_8 [0] : vector<20x16xf32> to vector<16xf32>
    %16 = vector.shape_cast %15 : vector<16xf32> to vector<1x16xf32>
    %17 = vector.shape_cast %12 : vector<1x16xf32> to vector<1x16xf32>
    %18 = vector.broadcast %17 : vector<1x16xf32> to vector<20x16xf32>
    %19 = vector.shape_cast %16 : vector<1x16xf32> to vector<1x16xf32>
    %20 = vector.broadcast %19 : vector<1x16xf32> to vector<20x16xf32>
    %21 = arith.select %8, %18, %20 : vector<20x16xi1>, vector<20x16xf32>
    %22 = arith.subf %5, %21 : vector<20x16xf32>
    %23 = math.exp %22 : vector<20x16xf32>
    %cst_9 = arith.constant 0.000000e+00 : f32
    %24 = vector.broadcast %cst_9 : f32 to vector<20x16xf32>
    %25 = arith.select %8, %23, %24 : vector<20x16xi1>, vector<20x16xf32>
    %cst_10 = arith.constant dense<0.000000e+00> : vector<16xf32>
    %26 = vector.multi_reduction <add>, %25, %cst_10 [0] : vector<20x16xf32> to vector<16xf32>
    %27 = vector.shape_cast %26 : vector<16xf32> to vector<1x16xf32>
    %cst_11 = arith.constant 0.000000e+00 : f32
    %28 = vector.broadcast %cst_11 : f32 to vector<20x16xf32>
    %29 = arith.select %8, %28, %23 : vector<20x16xi1>, vector<20x16xf32>
    %cst_12 = arith.constant dense<0.000000e+00> : vector<16xf32>
    %30 = vector.multi_reduction <add>, %29, %cst_12 [0] : vector<20x16xf32> to vector<16xf32>
    %31 = vector.shape_cast %30 : vector<16xf32> to vector<1x16xf32>
    %32 = tpu.reciprocal %27 {approx = true} : vector<1x16xf32> -> vector<1x16xf32>
    %33 = arith.mulf %27, %32 : vector<1x16xf32>
    %cst_13 = arith.constant 2.000000e+00 : f32
    %34 = vector.broadcast %cst_13 : f32 to vector<1x16xf32>
    %35 = arith.subf %34, %33 : vector<1x16xf32>
    %36 = arith.mulf %32, %35 : vector<1x16xf32>
    %37 = tpu.reciprocal %31 {approx = true} : vector<1x16xf32> -> vector<1x16xf32>
    %38 = arith.mulf %31, %37 : vector<1x16xf32>
    %cst_14 = arith.constant 2.000000e+00 : f32
    %39 = vector.broadcast %cst_14 : f32 to vector<1x16xf32>
    %40 = arith.subf %39, %38 : vector<1x16xf32>
    %41 = arith.mulf %37, %40 : vector<1x16xf32>
    %42 = vector.shape_cast %36 : vector<1x16xf32> to vector<1x16xf32>
    %43 = vector.broadcast %42 : vector<1x16xf32> to vector<20x16xf32>
    %44 = vector.shape_cast %41 : vector<1x16xf32> to vector<1x16xf32>
    %45 = vector.broadcast %44 : vector<1x16xf32> to vector<20x16xf32>
    %46 = arith.select %8, %43, %45 : vector<20x16xi1>, vector<20x16xf32>
    %47 = arith.mulf %23, %46 : vector<20x16xf32>
    %c0_15 = arith.constant 0 : index
    %c0_16 = arith.constant 0 : index
    %48 = vector.load %arg4[%c0_15, %c0_16] : memref<35x20xf32, #tpu.memory_space<vmem>>, vector<35x20xf32>
    %cst_17 = arith.constant dense<0.000000e+00> : vector<35x16xf32>
    %49 = tpu.matmul %48, %47, %cst_17 {dimension_numbers = #tpu.dot_dimension_numbers<[1], [0], [0], [1], [0, 0, 1, 1], [], []>} : vector<35x20xf32>, vector<20x16xf32>, vector<35x16xf32> -> vector<35x16xf32>
    %c0_18 = arith.constant 0 : index
    %c0_19 = arith.constant 0 : index
    %50 = vector.load %arg5[%c0_18, %c0_19] : memref<35x16xf32, #tpu.memory_space<vmem>>, vector<35x16xf32>
    tpu.vector_store %arg5[%c0_18, %c0_19], %49 {strides = array<i32>} : memref<35x16xf32, #tpu.memory_space<vmem>>, vector<35x16xf32>,
    return
  }
  func.func @transform_0(%arg0: i32) -> (i32, i32) {
    %c0_i32 = arith.constant 0 : i32
    %c0_i32_0 = arith.constant 0 : i32
    return %c0_i32, %arg0 : i32, i32
  }
  func.func @transform_1(%arg0: i32) -> (i32, i32) {
    %c0_i32 = arith.constant 0 : i32
    %c0_i32_0 = arith.constant 0 : i32
    %c0_i32_1 = arith.constant 0 : i32
    return %c0_i32, %c0_i32_0 : i32, i32
  }
  func.func @transform_2(%arg0: i32) -> (i32, i32) {
    %c0_i32 = arith.constant 0 : i32
    %c0_i32_0 = arith.constant 0 : i32
    %c0_i32_1 = arith.constant 0 : i32
    return %c0_i32, %c0_i32_0 : i32, i32
  }
  func.func @transform_3(%arg0: i32) -> (i32, i32) {
    %c0_i32 = arith.constant 0 : i32
    %c0_i32_0 = arith.constant 0 : i32
    %c0_i32_1 = arith.constant 0 : i32
    return %c0_i32, %c0_i32_0 : i32, i32
  }
  func.func @transform_4(%arg0: i32) -> (i32, i32) {
    %c0_i32 = arith.constant 0 : i32
    %c0_i32_0 = arith.constant 0 : i32
    return %c0_i32, %arg0 : i32, i32
  }
}

</mosaic_0001>

<llo_original>
// kernel: tpu_custom_call.1
$region0: #{tpu_custom_call.1}
  #allocation0 [shape = 'u32[]', space=smem, size = 0x4, offset = 0x4, fixed_abs, tag = 'smem constant byte address 0x4 - core index']
  #allocation1 [shape = 'u32[144,128]{1,0:T(1,128)}', space=vmem, size = 0x12000, scoped, tag = 'internal scratch']
  %s0 = inlined_call_operand.vmem [shape: f32[5,16], index: 0, kind: input, shape index: {}]
  %s1 = inlined_call_operand.vmem [shape: f32[20,5], index: 1, kind: input, shape index: {}]
  %s2 = inlined_call_operand.vmem [shape: f32[20,1], index: 2, kind: input, shape index: {}]
  %s3 = inlined_call_operand.vmem [shape: f32[35,20], index: 3, kind: input, shape index: {}]
  %s4 = inlined_call_operand.vmem [shape: f32[35,16], index: 4, kind: output, shape index: {}]
  %s5 = sld [smem:[#allocation0]]
  $region26: #{tpu_custom_call.1} parent=0
    _
  %s7 = ssub.s32 1, %s5
  %s8 = scalar_select 0, %s7, %s5
  // Predicated region
  $region2: #{tpu_custom_call.1} parent=0 // pred_check
    _
  $region3: #{tpu_custom_call.1} parent=0 // pred_check_branch
    %10 = sbr.rel (0) target = $region5
  $region4: #{tpu_custom_call.1} parent=0 // pred_region
    _
  $region5: #{tpu_custom_call.1} parent=0 // pred_fallthru
    _
  // Predicated region
  $region6: #{tpu_custom_call.1} parent=0 // pred_check
    _
  $region7: #{tpu_custom_call.1} parent=0 // pred_check_branch
    %12 = sbr.rel (0) target = $region9
  $region8: #{tpu_custom_call.1} parent=0 // pred_region
    _
  $region9: #{tpu_custom_call.1} parent=0 // pred_fallthru
    _
  // Predicated region
  $region10: #{tpu_custom_call.1} parent=0 // pred_check
    _
  $region11: #{tpu_custom_call.1} parent=0 // pred_check_branch
    %14 = sbr.rel (0) target = $region13
  $region12: #{tpu_custom_call.1} parent=0 // pred_region
    _
  $region13: #{tpu_custom_call.1} parent=0 // pred_fallthru
    _
  // Predicated region
  $region14: #{tpu_custom_call.1} parent=0 // pred_check
    _
  $region15: #{tpu_custom_call.1} parent=0 // pred_check_branch
    %16 = sbr.rel (0) target = $region17
  $region16: #{tpu_custom_call.1} parent=0 // pred_region
    _
  $region17: #{tpu_custom_call.1} parent=0 // pred_fallthru
    _
  %v17 = vld [vmem:[%s0] sm:$0x1f]
  %v18 = vld [vmem:[%s1] sm:$0xff]
  %v19 = vld [vmem:[%s1 + $0x8] sm:$0xff]
  %v20 = vld [vmem:[%s1 + $0x10] sm:$0xf]
  %v21 = vld [vmem:[%s2] sm:$0xff]
  %v22 = vld [vmem:[%s2 + $0x8] sm:$0xff]
  %v23 = vld [vmem:[%s2 + $0x10] sm:$0xf]
  %25 = vset.pattern.permute.xlu0 0
  %26 = vperm.xlu0 %25, %v21
  %v27 = vpop.permute.xlu0 %26
  %30 = vset.pattern.permute.xlu0 0
  %31 = vperm.xlu0 %30, %v22
  %v32 = vpop.permute.xlu0 %31
  %35 = vset.pattern.permute.xlu0 0
  %36 = vperm.xlu0 %35, %v23
  %v37 = vpop.permute.xlu0 %36
  %vm39 = vcmask 39936
  %v41 = vsel %vm39, %v18, 0
  %v44 = vsel %vm39, %v19, 0
  %v47 = vsel %vm39, %v20, 0
  %vm49 = vcmask 1044480
  %v51 = vsel %vm49, %v17, 0
  %53 = vmatprep.subr.mxu0 0.0
  %54 = vmatpush1.msra.mxu0 %v51
  %55 = vmatprep.subr.mxu0 0.0
  %56 = vmatpush1.msra.mxu0 0.0
  %57 = vmatprep.subr.mxu0 0.0
  %58 = vmatpush1.msra.mxu0 0.0
  %59 = vmatprep.subr.mxu0 0.0
  %60 = vmatpush1.msra.mxu0 0.0
  %61 = vmatprep.subr.mxu0 0.0
  %62 = vmatpush1.msra.mxu0 0.0
  %63 = vmatprep.subr.mxu0 0.0
  %64 = vmatpush1.msra.mxu0 0.0
  %65 = vmatprep.subr.mxu0 0.0
  %66 = vmatpush1.msra.mxu0 0.0
  %67 = vmatprep.subr.mxu0 0.0
  %68 = vmatpush1.msra.mxu0 0.0
  %69 = vmatprep.subr.mxu0 0.0
  %70 = vmatpush1.msra.mxu0 0.0
  %71 = vmatprep.subr.mxu0 0.0
  %72 = vmatpush1.msra.mxu0 0.0
  %73 = vmatprep.subr.mxu0 0.0
  %74 = vmatpush1.msra.mxu0 0.0
  %75 = vmatprep.subr.mxu0 0.0
  %76 = vmatpush1.msra.mxu0 0.0
  %77 = vmatprep.subr.mxu0 0.0
  %78 = vmatpush1.msra.mxu0 0.0
  %79 = vmatprep.subr.mxu0 0.0
  %80 = vmatpush1.msra.mxu0 0.0
  %81 = vmatprep.subr.mxu0 0.0
  %82 = vmatpush1.msra.mxu0 0.0
  %83 = vmatprep.subr.mxu0 0.0
  %84 = vmatpush1.msra.mxu0 0.0
  %85 = vmatprep.subr.mxu0 0.0
  %86 = vmatpush1.msra.mxu0 0.0
  %87 = vmatprep.subr.mxu0 0.0
  %88 = vmatpush1.msra.mxu0 0.0
  %89 = vmatprep.subr.mxu0 0.0
  %90 = vmatpush1.msra.mxu0 0.0
  %91 = vmatprep.subr.mxu0 0.0
  %92 = vmatpush1.msra.mxu0 0.0
  %93 = vmatprep.subr.mxu0 0.0
  %94 = vmatpush1.msra.mxu0 0.0
  %95 = vmatprep.subr.mxu0 0.0
  %96 = vmatpush1.msra.mxu0 0.0
  %97 = vmatprep.subr.mxu0 0.0
  %98 = vmatpush1.msra.mxu0 0.0
  %99 = vmatprep.subr.mxu0 0.0
  %100 = vmatpush1.msra.mxu0 0.0
  %101 = vmatprep.subr.mxu0 0.0
  %102 = vmatpush1.msra.mxu0 0.0
  %103 = vmatprep.subr.mxu0 0.0
  %104 = vmatpush1.msra.mxu0 0.0
  %105 = vmatprep.subr.mxu0 0.0
  %106 = vmatpush1.msra.mxu0 0.0
  %107 = vmatprep.subr.mxu0 0.0
  %108 = vmatpush1.msra.mxu0 0.0
  %109 = vmatprep.subr.mxu0 0.0
  %110 = vmatpush1.msra.mxu0 0.0
  %111 = vmatprep.subr.mxu0 0.0
  %112 = vmatpush1.msra.mxu0 0.0
  %113 = vmatprep.subr.mxu0 0.0
  %114 = vmatpush1.msra.mxu0 0.0
  %115 = vmatprep.subr.mxu0 0.0
  %116 = vmatpush1.msra.mxu0 0.0
  %117 = vmatprep.mubr.f32.mxu0 0.0
  %118 = vmatmul.mubr.f32.gmra.mrb[0].mxu0 %v41
  %v119 = vpop.f32.mrb[0].mxu0
  %v120 = vadd.f32 %v27, %v119
  %v121 = vpop.f32.mrb[0].mxu0
  %122 = vmatprep.mubr.f32.mxu0 0.0
  %123 = vmatmul.mubr.f32.gmra.mrb[0].mxu0 %v44
  %v124 = vpop.f32.mrb[0].mxu0
  %v125 = vadd.f32 %v32, %v124
  %v126 = vpop.f32.mrb[0].mxu0
  %127 = vmatprep.mubr.f32.mxu0 0.0
  %128 = vmatmul.mubr.f32.gmra.mrb[0].mxu0 %v47
  %v129 = vpop.f32.mrb[0].mxu0
  %v130 = vadd.f32 %v37, %v129
  %v131 = vpop.f32.mrb[0].mxu0
  %132 = vdwg.mxu0
  %v133 = vlaneseq
  %v134 = vshrl.u32 %v133, 7
  %v135 = vadd.s32 %v134, 8
  %v136 = vadd.s32 %v134, 16
  %vm137 = vcmp.lt.s32.totalorder %v134, 10
  %vm138 = vcmp.lt.s32.totalorder %v135, 10
  %vm139 = vcmp.lt.s32.totalorder %v136, 10
  %v140 = vsel %vm137, %v120, -inf
  %v141 = vsel %vm138, %v125, -inf
  %v142 = vsel %vm139, %v130, -inf
  %vm143 = vcmask 130048
  %v144 = vsel %vm143, %v140, -inf
  %v145 = vsel %vm143, %v141, -inf
  %vm146 = vcmask 125952
  %v147 = vsel %vm146, %v142, -inf
  %v148 = vmax.f32 %v144, %v145
  %v149 = vmax.f32 %v148, %v147
  %v150 = vrot.slane %v149, 4
  %v151 = vmax.f32 %v149, %v150
  %v152 = vrot.slane %v151, 2
  %v153 = vmax.f32 %v151, %v152
  %v154 = vrot.slane %v153, 1
  %v155 = vmax.f32 %v153, %v154
  %v156 = vsel %vm137, -inf, %v120
  %v157 = vsel %vm138, -inf, %v125
  %v158 = vsel %vm139, -inf, %v130
  %v159 = vsel %vm143, %v156, -inf
  %v160 = vsel %vm143, %v157, -inf
  %v161 = vsel %vm146, %v158, -inf
  %v162 = vmax.f32 %v159, %v160
  %v163 = vmax.f32 %v162, %v161
  %v164 = vrot.slane %v163, 4
  %v165 = vmax.f32 %v163, %v164
  %v166 = vrot.slane %v165, 2
  %v167 = vmax.f32 %v165, %v166
  %v168 = vrot.slane %v167, 1
  %v169 = vmax.f32 %v167, %v168
  %v170 = vsel %vm137, %v155, %v169
  %v171 = vsel %vm138, %v155, %v169
  %v172 = vsel %vm139, %v155, %v169
  %v173 = vsub.f32 %v120, %v170
  %v174 = vsub.f32 %v125, %v171
  %v175 = vsub.f32 %v130, %v172
  %v176 = vmul.f32 %v173, 1.442695
  %v177 = vpow.pop %v176
  %v178 = vmul.f32 %v174, 1.442695
  %v179 = vpow.pop %v178
  %v180 = vmul.f32 %v175, 1.442695
  %v181 = vpow.pop %v180
  %v182 = vsel %vm137, %v177, 0.0
  %v183 = vsel %vm138, %v179, 0.0
  %v184 = vsel %vm139, %v181, 0.0
  %v185 = vsel %vm143, %v182, 0.0
  %v186 = vsel %vm143, %v183, 0.0
  %v187 = vadd.f32 %v185, %v186
  %v188 = vsel %vm146, %v184, 0.0
  %v189 = vadd.f32 %v187, %v188
  %v190 = vrot.slane %v189, 4
  %v191 = vadd.f32 %v189, %v190
  %v192 = vrot.slane %v191, 2
  %v193 = vadd.f32 %v191, %v192
  %v194 = vrot.slane %v193, 1
  %v195 = vadd.f32 %v193, %v194
  %v196 = vsel %vm137, 0.0, %v177
  %v197 = vsel %vm138, 0.0, %v179
  %v198 = vsel %vm139, 0.0, %v181
  %v199 = vsel %vm143, %v196, 0.0
  %v200 = vsel %vm143, %v197, 0.0
  %v201 = vadd.f32 %v199, %v200
  %v202 = vsel %vm146, %v198, 0.0
  %v203 = vadd.f32 %v201, %v202
  %v204 = vrot.slane %v203, 4
  %v205 = vadd.f32 %v203, %v204
  %v206 = vrot.slane %v205, 2
  %v207 = vadd.f32 %v205, %v206
  %v208 = vrot.slane %v207, 1
  %v209 = vadd.f32 %v207, %v208
  %v210 = vrcp.pop %v195
  %v211 = vmul.f32 %v195, %v210
  %v212 = vsub.f32 2.0, %v211
  %v213 = vmul.f32 %v210, %v212
  %v214 = vrcp.pop %v209
  %v215 = vmul.f32 %v209, %v214
  %v216 = vsub.f32 2.0, %v215
  %v217 = vmul.f32 %v214, %v216
  %v218 = vsel %vm137, %v213, %v217
  %v219 = vsel %vm138, %v213, %v217
  %v220 = vsel %vm139, %v213, %v217
  %v221 = vmul.f32 %v177, %v218
  %v222 = vmul.f32 %v179, %v219
  %v223 = vmul.f32 %v181, %v220
  %v224 = vld [vmem:[%s3] sm:$0xff]
  %v225 = vld [vmem:[%s3 + $0x8] sm:$0xff]
  %v226 = vld [vmem:[%s3 + $0x10] sm:$0xff]
  %v227 = vld [vmem:[%s3 + $0x18] sm:$0xff]
  %v228 = vld [vmem:[%s3 + $0x20] sm:$0x7]
  %vm229 = vcmask 162816
  %v231 = vsel %vm229, %v224, 0
  %v234 = vsel %vm229, %v225, 0
  %v237 = vsel %vm229, %v226, 0
  %v240 = vsel %vm229, %v227, 0
  %v243 = vsel %vm229, %v228, 0
  %vm245 = vcmask 1043456
  %v247 = vsel %vm245, %v223, 0
  %249 = vmatprep.subr.mxu0 0.0
  %250 = vmatpush1.msra.mxu0 %v221
  %251 = vmatprep.subr.mxu0 0.0
  %252 = vmatpush1.msra.mxu0 %v222
  %253 = vmatprep.subr.mxu0 0.0
  %254 = vmatpush1.msra.mxu0 %v247
  %255 = vmatprep.subr.mxu0 0.0
  %256 = vmatpush1.msra.mxu0 0.0
  %257 = vmatprep.subr.mxu0 0.0
  %258 = vmatpush1.msra.mxu0 0.0
  %259 = vmatprep.subr.mxu0 0.0
  %260 = vmatpush1.msra.mxu0 0.0
  %261 = vmatprep.subr.mxu0 0.0
  %262 = vmatpush1.msra.mxu0 0.0
  %263 = vmatprep.subr.mxu0 0.0
  %264 = vmatpush1.msra.mxu0 0.0
  %265 = vmatprep.subr.mxu0 0.0
  %266 = vmatpush1.msra.mxu0 0.0
  %267 = vmatprep.subr.mxu0 0.0
  %268 = vmatpush1.msra.mxu0 0.0
  %269 = vmatprep.subr.mxu0 0.0
  %270 = vmatpush1.msra.mxu0 0.0
  %271 = vmatprep.subr.mxu0 0.0
  %272 = vmatpush1.msra.mxu0 0.0
  %273 = vmatprep.subr.mxu0 0.0
  %274 = vmatpush1.msra.mxu0 0.0
  %275 = vmatprep.subr.mxu0 0.0
  %276 = vmatpush1.msra.mxu0 0.0
  %277 = vmatprep.subr.mxu0 0.0
  %278 = vmatpush1.msra.mxu0 0.0
  %279 = vmatprep.subr.mxu0 0.0
  %280 = vmatpush1.msra.mxu0 0.0
  %281 = vmatprep.subr.mxu0 0.0
  %282 = vmatpush1.msra.mxu0 0.0
  %283 = vmatprep.subr.mxu0 0.0
  %284 = vmatpush1.msra.mxu0 0.0
  %285 = vmatprep.subr.mxu0 0.0
  %286 = vmatpush1.msra.mxu0 0.0
  %287 = vmatprep.subr.mxu0 0.0
  %288 = vmatpush1.msra.mxu0 0.0
  %289 = vmatprep.subr.mxu0 0.0
  %290 = vmatpush1.msra.mxu0 0.0
  %291 = vmatprep.subr.mxu0 0.0
  %292 = vmatpush1.msra.mxu0 0.0
  %293 = vmatprep.subr.mxu0 0.0
  %294 = vmatpush1.msra.mxu0 0.0
  %295 = vmatprep.subr.mxu0 0.0
  %296 = vmatpush1.msra.mxu0 0.0
  %297 = vmatprep.subr.mxu0 0.0
  %298 = vmatpush1.msra.mxu0 0.0
  %299 = vmatprep.subr.mxu0 0.0
  %300 = vmatpush1.msra.mxu0 0.0
  %301 = vmatprep.subr.mxu0 0.0
  %302 = vmatpush1.msra.mxu0 0.0
  %303 = vmatprep.subr.mxu0 0.0
  %304 = vmatpush1.msra.mxu0 0.0
  %305 = vmatprep.subr.mxu0 0.0
  %306 = vmatpush1.msra.mxu0 0.0
  %307 = vmatprep.subr.mxu0 0.0
  %308 = vmatpush1.msra.mxu0 0.0
  %309 = vmatprep.subr.mxu0 0.0
  %310 = vmatpush1.msra.mxu0 0.0
  %311 = vmatprep.subr.mxu0 0.0
  %312 = vmatpush1.msra.mxu0 0.0
  %313 = vmatprep.mubr.f32.mxu0 0.0
  %314 = vmatmul.mubr.f32.gmra.mrb[0].mxu0 %v231
  %v315 = vpop.f32.mrb[0].mxu0
  %v316 = vadd.f32 0.0, %v315
  %v317 = vpop.f32.mrb[0].mxu0
  %318 = vmatprep.mubr.f32.mxu0 0.0
  %319 = vmatmul.mubr.f32.gmra.mrb[0].mxu0 %v234
  %v320 = vpop.f32.mrb[0].mxu0
  %v321 = vadd.f32 0.0, %v320
  %v322 = vpop.f32.mrb[0].mxu0
  %323 = vmatprep.mubr.f32.mxu0 0.0
  %324 = vmatmul.mubr.f32.gmra.mrb[0].mxu0 %v237
  %v325 = vpop.f32.mrb[0].mxu0
  %v326 = vadd.f32 0.0, %v325
  %v327 = vpop.f32.mrb[0].mxu0
  %328 = vmatprep.mubr.f32.mxu0 0.0
  %329 = vmatmul.mubr.f32.gmra.mrb[0].mxu0 %v240
  %v330 = vpop.f32.mrb[0].mxu0
  %v331 = vadd.f32 0.0, %v330
  %v332 = vpop.f32.mrb[0].mxu0
  %333 = vmatprep.mubr.f32.mxu0 0.0
  %334 = vmatmul.mubr.f32.gmra.mrb[0].mxu0 %v243
  %v335 = vpop.f32.mrb[0].mxu0
  %v336 = vadd.f32 0.0, %v335
  %v337 = vpop.f32.mrb[0].mxu0
  %338 = vdwg.mxu0
  %339 = vst.msk [vmem:[%s4] sm:$0xff] %vm143, %v316
  %340 = vst.msk [vmem:[%s4 + $0x8] sm:$0xff] %vm143, %v321
  %341 = vst.msk [vmem:[%s4 + $0x10] sm:$0xff] %vm143, %v326
  %342 = vst.msk [vmem:[%s4 + $0x18] sm:$0xff] %vm143, %v331
  %vm343 = vcmask 124928
  %344 = vst.msk [vmem:[%s4 + $0x20] sm:$0x7] %vm343, %v336
  // Predicated region
  $region18: #{tpu_custom_call.1} parent=0 // pred_check
    _
  $region19: #{tpu_custom_call.1} parent=0 // pred_check_branch
    %346 = sbr.rel (0) target = $region21
  $region20: #{tpu_custom_call.1} parent=0 // pred_region
    _
  $region21: #{tpu_custom_call.1} parent=0 // pred_fallthru
    _
  // Predicated region
  $region22: #{tpu_custom_call.1} parent=0 // pred_check
    _
  $region23: #{tpu_custom_call.1} parent=0 // pred_check_branch
    %348 = sbr.rel (0) target = $region25
  $region24: #{tpu_custom_call.1} parent=0 // pred_region
    _
  $region25: #{tpu_custom_call.1} parent=0 // pred_fallthru
    _

</llo_original>
